<compile_context>
chip_gen: v6e
topology: v6e:2x2x1
jax: 0.10.0
libtpu: 0.0.40
codegen_flags: <defaults>
</compile_context>

<pallas_src>
import jax
import jax.numpy as jnp
from jax.experimental import pallas as pl
from jax.experimental.pallas import tpu as pltpu


def _policy_net_kernel(x_ref, w1_ref, b1_ref, w2_ref, b2_ref, o_ref):
    # In-kernel bf16 cast of the activation (free VPU work hidden under the
    # MXU/DMA); weights arrive already in bf16 from the (tiny) wrapper cast.
    x_bf = x_ref[...].astype(jnp.bfloat16)                    # (TB, S)

    # fc1 in batch-on-lanes layout: (H, S) x (TB, S) contracted on S -> (H, TB).
    h = jax.lax.dot_general(
        w1_ref[...], x_bf,
        dimension_numbers=(((1,), (1,)), ((), ())),
        preferred_element_type=jnp.float32)
    h = jnp.maximum(h + b1_ref[...], 0.0)                     # bias + ReLU, f32

    # fc2: (A, H) x (H, TB) -> (A, TB).  Small weight, kept in f32.
    logits = jax.lax.dot_general(
        w2_ref[...], h,
        dimension_numbers=(((1,), (0,)), ((), ())),
        preferred_element_type=jnp.float32)
    logits = logits + b2_ref[...]

    # Numerically stable softmax over the action (sublane) axis; exact divide
    # so every column is a proper probability distribution.
    m = jnp.max(logits, axis=0, keepdims=True)                # (1, TB)
    e = jnp.exp(logits - m)                                   # EUP
    denom = jnp.sum(e, axis=0, keepdims=True)                 # (1, TB)
    o_ref[...] = (e / denom).astype(o_ref.dtype)              # lane-dense store


def _round_up(n, m):
    return ((n + m - 1) // m) * m


def _choose_tb(B, block_b):
    """Pick a batch tile.

    Small batches: one block covering the full batch (block dims equal the
    full array dims, so the (8,128) tiling constraint is trivially met).
    Large batches: lane-aligned tiles (multiple of 128), capped so the grid
    keeps >= 2 steps for megacore sharding on v7x.
    """
    if B <= 256:
        return B
    block_b = max(128, (block_b // 128) * 128)
    tb_half = _round_up((B + 1) // 2, 128)     # ~half the batch, lane-aligned
    return min(block_b, tb_half)


def policy_net_forward(x, w1, b1, w2, b2, *, block_b=4096):
    """x: (B, state_dim); w1: (hidden, state_dim); b1: (hidden,);
    w2: (action_dim, hidden); b2: (action_dim,).
    Returns softmax action probabilities of shape (B, action_dim), float32."""
    B, S = x.shape
    H, S_w = w1.shape
    A, H_w = w2.shape
    assert S_w == S and H_w == H and b1.shape == (H,) and b2.shape == (A,)

    # Tiny one-time parameter casts/reshapes (KB-scale): fc1 weight in bf16
    # for the MXU; biases as columns to broadcast over the lane (batch) axis.
    w1_bf = jnp.asarray(w1, jnp.bfloat16)                 # (H, S), torch layout
    b1_col = jnp.asarray(b1, jnp.float32).reshape(H, 1)
    w2_f32 = jnp.asarray(w2, jnp.float32)                 # (A, H), torch layout
    b2_col = jnp.asarray(b2, jnp.float32).reshape(A, 1)

    TB = _choose_tb(B, block_b)
    grid = (pl.cdiv(B, TB),)

    cost = pl.CostEstimate(
        flops=2 * B * S * H + 2 * B * H * A,
        transcendentals=B * A,
        bytes_accessed=(x.size * 4 + w1_bf.size * 2 + w2_f32.size * 4
                        + (H + A) * 4 + B * A * 4))

    out_t = pl.pallas_call(
        _policy_net_kernel,
        out_shape=jax.ShapeDtypeStruct((A, B), jnp.float32),
        grid=grid,
        in_specs=[
            pl.BlockSpec((TB, S), lambda i: (i, 0)),   # x: blocked over batch
            pl.BlockSpec((H, S), lambda i: (0, 0)),    # w1: VMEM-resident
            pl.BlockSpec((H, 1), lambda i: (0, 0)),    # b1: VMEM-resident
            pl.BlockSpec((A, H), lambda i: (0, 0)),    # w2: VMEM-resident
            pl.BlockSpec((A, 1), lambda i: (0, 0)),    # b2: VMEM-resident
        ],
        out_specs=pl.BlockSpec((A, TB), lambda i: (0, i)),  # lane-dense output
        compiler_params=pltpu.CompilerParams(
            dimension_semantics=("parallel",)),
        cost_estimate=cost,
    )(x, w1_bf, b1_col, w2_f32, b2_col)

    # Single transpose at the call boundary back to the module's (B, A) layout.
    return out_t.T


def _torch_like_linear_init(key, out_features, in_features):
    """PyTorch nn.Linear default: U(-1/sqrt(fan_in), 1/sqrt(fan_in))."""
    kw, kb = jax.random.split(key)
    bound = 1.0 / jnp.sqrt(jnp.float32(in_features))
    w = jax.random.uniform(kw, (out_features, in_features), jnp.float32,
                           minval=-bound, maxval=bound)
    b = jax.random.uniform(kb, (out_features,), jnp.float32,
                           minval=-bound, maxval=bound)
    return w, b


if __name__ == "__main__":
    batch, state_dim, hidden_dim, action_dim = 8, 16, 32, 4

    key = jax.random.PRNGKey(0)
    kx, k1, k2 = jax.random.split(key, 3)

    x = jax.random.normal(kx, (batch, state_dim), jnp.float32)
    w1, b1 = _torch_like_linear_init(k1, hidden_dim, state_dim)    # fc1
    w2, b2 = _torch_like_linear_init(k2, action_dim, hidden_dim)   # fc2

    out = jax.block_until_ready(policy_net_forward(x, w1, b1, w2, b2))

    # Pure-JAX references: full f32, and one emulating the kernel's bf16 fc1.
    ref_f32 = jax.nn.softmax(
        jnp.maximum(x @ w1.T + b1, 0.0) @ w2.T + b2, axis=-1)
    h_bf = jnp.maximum(
        jnp.dot(x.astype(jnp.bfloat16), w1.astype(jnp.bfloat16).T,
                preferred_element_type=jnp.float32) + b1, 0.0)
    ref_bf16 = jax.nn.softmax(h_bf @ w2.T + b2, axis=-1)

    assert out.shape == (batch, action_dim)
    assert jnp.allclose(jnp.sum(out, axis=-1), 1.0, atol=1e-3)  # exact divide
    assert jnp.allclose(out, ref_bf16, atol=1e-2, rtol=1e-2)    # same bf16 path
    assert jnp.allclose(out, ref_f32, atol=2e-2, rtol=2e-2)     # vs full-f32

    print("KERNEL_OK")
</pallas_src>

<mosaic_0001>
module attributes {stable_mosaic.version = 11 : i64} {
  func.func @_policy_net_kernel(%arg0: i32, %arg1: memref<8x16xf32, #tpu.memory_space<vmem>>, %arg2: memref<32x16xbf16, #tpu.memory_space<vmem>>, %arg3: memref<32x1xf32, #tpu.memory_space<vmem>>, %arg4: memref<4x32xf32, #tpu.memory_space<vmem>>, %arg5: memref<4x1xf32, #tpu.memory_space<vmem>>, %arg6: memref<4x8xf32, #tpu.memory_space<vmem>>) attributes {dimension_semantics = [#tpu.dimension_semantics<parallel>], iteration_bounds = array<i64: 1>, scalar_prefetch = 0 : i64, scratch_operands = 0 : i64, tpu.core_type = #tpu.core_type<tc>, window_params = [{transform_indices = @transform_0, window_bounds = array<i64: 8, 16>}, {pipeline_mode = #tpu.pipeline_mode<synchronous>, transform_indices = @transform_1, window_bounds = array<i64: 32, 16>}, {pipeline_mode = #tpu.pipeline_mode<synchronous>, transform_indices = @transform_2, window_bounds = array<i64: 32, 1>}, {pipeline_mode = #tpu.pipeline_mode<synchronous>, transform_indices = @transform_3, window_bounds = array<i64: 4, 32>}, {pipeline_mode = #tpu.pipeline_mode<synchronous>, transform_indices = @transform_4, window_bounds = array<i64: 4, 1>}, {transform_indices = @transform_5, window_bounds = array<i64: 4, 8>}]} {
    %c0 = arith.constant 0 : index
    %c0_0 = arith.constant 0 : index
    %0 = vector.load %arg1[%c0, %c0_0] : memref<8x16xf32, #tpu.memory_space<vmem>>, vector<8x16xf32>
    %1 = arith.truncf %0 : vector<8x16xf32> to vector<8x16xbf16>
    %c0_1 = arith.constant 0 : index
    %c0_2 = arith.constant 0 : index
    %2 = vector.load %arg2[%c0_1, %c0_2] : memref<32x16xbf16, #tpu.memory_space<vmem>>, vector<32x16xbf16>
    %cst = arith.constant dense<0.000000e+00> : vector<32x8xf32>
    %3 = tpu.matmul %2, %1, %cst {dimension_numbers = #tpu.dot_dimension_numbers<[1], [1], [0], [0], [0, 0, 1, 0], [], []>} : vector<32x16xbf16>, vector<8x16xbf16>, vector<32x8xf32> -> vector<32x8xf32>
    %c0_3 = arith.constant 0 : index
    %c0_4 = arith.constant 0 : index
    %4 = vector.load %arg3[%c0_3, %c0_4] : memref<32x1xf32, #tpu.memory_space<vmem>>, vector<32x1xf32>
    %5 = vector.broadcast %4 : vector<32x1xf32> to vector<32x8xf32>
    %6 = arith.addf %3, %5 : vector<32x8xf32>
    %cst_5 = arith.constant 0.000000e+00 : f32
    %7 = vector.broadcast %cst_5 : f32 to vector<32x8xf32>
    %8 = arith.maximumf %6, %7 : vector<32x8xf32>
    %c0_6 = arith.constant 0 : index
    %c0_7 = arith.constant 0 : index
    %9 = vector.load %arg4[%c0_6, %c0_7] : memref<4x32xf32, #tpu.memory_space<vmem>>, vector<4x32xf32>
    %cst_8 = arith.constant dense<0.000000e+00> : vector<4x8xf32>
    %10 = tpu.matmul %9, %8, %cst_8 {dimension_numbers = #tpu.dot_dimension_numbers<[1], [0], [0], [1], [0, 0, 1, 1], [], []>} : vector<4x32xf32>, vector<32x8xf32>, vector<4x8xf32> -> vector<4x8xf32>
    %c0_9 = arith.constant 0 : index
    %c0_10 = arith.constant 0 : index
    %11 = vector.load %arg5[%c0_9, %c0_10] : memref<4x1xf32, #tpu.memory_space<vmem>>, vector<4x1xf32>
    %12 = vector.broadcast %11 : vector<4x1xf32> to vector<4x8xf32>
    %13 = arith.addf %10, %12 : vector<4x8xf32>
    %cst_11 = arith.constant dense<0xFF800000> : vector<8xf32>
    %14 = vector.multi_reduction <maximumf>, %13, %cst_11 [0] : vector<4x8xf32> to vector<8xf32>
    %15 = vector.shape_cast %14 : vector<8xf32> to vector<1x8xf32>
    %16 = vector.broadcast %15 : vector<1x8xf32> to vector<4x8xf32>
    %17 = arith.subf %13, %16 : vector<4x8xf32>
    %18 = math.exp %17 : vector<4x8xf32>
    %cst_12 = arith.constant dense<0.000000e+00> : vector<8xf32>
    %19 = vector.multi_reduction <add>, %18, %cst_12 [0] : vector<4x8xf32> to vector<8xf32>
    %20 = vector.shape_cast %19 : vector<8xf32> to vector<1x8xf32>
    %21 = vector.broadcast %20 : vector<1x8xf32> to vector<4x8xf32>
    %22 = arith.divf %18, %21 : vector<4x8xf32>
    %c0_13 = arith.constant 0 : index
    %c0_14 = arith.constant 0 : index
    %23 = vector.load %arg6[%c0_13, %c0_14] : memref<4x8xf32, #tpu.memory_space<vmem>>, vector<4x8xf32>
    tpu.vector_store %arg6[%c0_13, %c0_14], %22 {strides = array<i32>} : memref<4x8xf32, #tpu.memory_space<vmem>>, vector<4x8xf32>,
    return
  }
  func.func @transform_0(%arg0: i32) -> (i32, i32) {
    %c0_i32 = arith.constant 0 : i32
    %c0_i32_0 = arith.constant 0 : i32
    return %arg0, %c0_i32 : i32, i32
  }
  func.func @transform_1(%arg0: i32) -> (i32, i32) {
    %c0_i32 = arith.constant 0 : i32
    %c0_i32_0 = arith.constant 0 : i32
    %c0_i32_1 = arith.constant 0 : i32
    return %c0_i32, %c0_i32_0 : i32, i32
  }
  func.func @transform_2(%arg0: i32) -> (i32, i32) {
    %c0_i32 = arith.constant 0 : i32
    %c0_i32_0 = arith.constant 0 : i32
    %c0_i32_1 = arith.constant 0 : i32
    return %c0_i32, %c0_i32_0 : i32, i32
  }
  func.func @transform_3(%arg0: i32) -> (i32, i32) {
    %c0_i32 = arith.constant 0 : i32
    %c0_i32_0 = arith.constant 0 : i32
    %c0_i32_1 = arith.constant 0 : i32
    return %c0_i32, %c0_i32_0 : i32, i32
  }
  func.func @transform_4(%arg0: i32) -> (i32, i32) {
    %c0_i32 = arith.constant 0 : i32
    %c0_i32_0 = arith.constant 0 : i32
    %c0_i32_1 = arith.constant 0 : i32
    return %c0_i32, %c0_i32_0 : i32, i32
  }
  func.func @transform_5(%arg0: i32) -> (i32, i32) {
    %c0_i32 = arith.constant 0 : i32
    %c0_i32_0 = arith.constant 0 : i32
    return %c0_i32, %arg0 : i32, i32
  }
}

</mosaic_0001>

<llo_original>
// kernel: tpu_custom_call.1
$region0: #{tpu_custom_call.1}
  #allocation0 [shape = 'u32[]', space=smem, size = 0x4, offset = 0x4, fixed_abs, tag = 'smem constant byte address 0x4 - core index']
  #allocation1 [shape = 'u32[144,128]{1,0:T(1,128)}', space=vmem, size = 0x12000, scoped, tag = 'internal scratch']
  %s0 = inlined_call_operand.vmem [shape: f32[8,16], index: 0, kind: input, shape index: {}]
  %s1 = inlined_call_operand.vmem [shape: bf16[32,16], index: 1, kind: input, shape index: {}]
  %s2 = inlined_call_operand.vmem [shape: f32[32,1], index: 2, kind: input, shape index: {}]
  %s3 = inlined_call_operand.vmem [shape: f32[4,32], index: 3, kind: input, shape index: {}]
  %s4 = inlined_call_operand.vmem [shape: f32[4,1], index: 4, kind: input, shape index: {}]
  %s5 = inlined_call_operand.hbm [shape: f32[4,8], index: 5, kind: output, shape index: {}]
  %s6 = sld [smem:[#allocation0]]
  $region30: #{tpu_custom_call.1} parent=0
    _
  %s8 = ssub.s32 1, %s6
  %s9 = scalar_select 0, %s8, %s6
  $region1: #{tpu_custom_call.1} parent=0
    #allocation2 [shape = 'u8[2048]{0}', space=vmem, size = 0x800, scoped, tag = 'output window, operand 0, single buffered']
    #allocation3 [shape = 's32[1]{0}', space=sflag, size = 0x4, scoped, tag = 'scoped memory for tpu_custom_call.1']
    %10 = vsyncpa [#allocation3], 0
    // Predicated region
    $region2: #{tpu_custom_call.1} parent=1 // pred_check
      _
    $region3: #{tpu_custom_call.1} parent=1 // pred_check_branch
      %12 = sbr.rel (0) target = $region5
    $region4: #{tpu_custom_call.1} parent=1 // pred_region
      _
    $region5: #{tpu_custom_call.1} parent=1 // pred_fallthru
      _
    // Predicated region
    $region6: #{tpu_custom_call.1} parent=1 // pred_check
      _
    $region7: #{tpu_custom_call.1} parent=1 // pred_check_branch
      %14 = sbr.rel (0) target = $region9
    $region8: #{tpu_custom_call.1} parent=1 // pred_region
      _
    $region9: #{tpu_custom_call.1} parent=1 // pred_fallthru
      _
    // Predicated region
    $region10: #{tpu_custom_call.1} parent=1 // pred_check
      _
    $region11: #{tpu_custom_call.1} parent=1 // pred_check_branch
      %16 = sbr.rel (0) target = $region13
    $region12: #{tpu_custom_call.1} parent=1 // pred_region
      _
    $region13: #{tpu_custom_call.1} parent=1 // pred_fallthru
      _
    // Predicated region
    $region14: #{tpu_custom_call.1} parent=1 // pred_check
      _
    $region15: #{tpu_custom_call.1} parent=1 // pred_check_branch
      %18 = sbr.rel (0) target = $region17
    $region16: #{tpu_custom_call.1} parent=1 // pred_region
      _
    $region17: #{tpu_custom_call.1} parent=1 // pred_fallthru
      _
    // Predicated region
    $region18: #{tpu_custom_call.1} parent=1 // pred_check
      _
    $region19: #{tpu_custom_call.1} parent=1 // pred_check_branch
      %20 = sbr.rel (0) target = $region21
    $region20: #{tpu_custom_call.1} parent=1 // pred_region
      _
    $region21: #{tpu_custom_call.1} parent=1 // pred_fallthru
      _
    %v22 = vld [vmem:[%s0] sm:$0xff]
    %v23 = vpack.c.bf16 %v22, %v22
    %v24 = vld [vmem:[%s1] sm:$0xf]
    %v25 = vld [vmem:[%s1 + $0x4] sm:$0xf]
    %v26 = vld [vmem:[%s1 + $0x8] sm:$0xf]
    %v27 = vld [vmem:[%s1 + $0xc] sm:$0xf]
    %v28 = vld [vmem:[%s2] sm:$0xff]
    %v29 = vld [vmem:[%s2 + $0x8] sm:$0xff]
    %v30 = vld [vmem:[%s2 + $0x10] sm:$0xff]
    %v31 = vld [vmem:[%s2 + $0x18] sm:$0xff]
    %33 = vset.pattern.permute.xlu0 0
    %34 = vperm.xlu0 %33, %v28
    %v35 = vpop.permute.xlu0 %34
    %38 = vset.pattern.permute.xlu0 0
    %39 = vperm.xlu0 %38, %v29
    %v40 = vpop.permute.xlu0 %39
    %43 = vset.pattern.permute.xlu0 0
    %44 = vperm.xlu0 %43, %v30
    %v45 = vpop.permute.xlu0 %44
    %48 = vset.pattern.permute.xlu0 0
    %49 = vperm.xlu0 %48, %v31
    %v50 = vpop.permute.xlu0 %49
    %v56 = vunpack.c.l.b16 %v24
    %v57 = vunpack.c.l.b16 %v25
    %v58 = vunpack.c.l.b16 %v26
    %v59 = vunpack.c.l.b16 %v27
    %v60 = vpack.c.b16 %v57, %v56
    %v61 = vpack.c.b16 %v59, %v58
    %vm62 = vcmask 130048
    %v64 = vsel %vm62, %v60, 0
    %v67 = vsel %vm62, %v61, 0
    %v70 = vsel %vm62, %v23, 0
    %72 = vmatprep.subr.bf16.mxu0 0
    %73 = vmatpush1.bf16.xpose.msra.mxu0 0
    %74 = vmatprep.subr.bf16.mxu0 0
    %75 = vmatpush1.bf16.xpose.msra.mxu0 0
    %76 = vmatprep.subr.bf16.mxu0 0
    %77 = vmatpush1.bf16.xpose.msra.mxu0 0
    %78 = vmatprep.subr.bf16.mxu0 0
    %79 = vmatpush1.bf16.xpose.msra.mxu0 0
    %80 = vmatprep.subr.bf16.mxu0 0
    %81 = vmatpush1.bf16.xpose.msra.mxu0 0
    %82 = vmatprep.subr.bf16.mxu0 0
    %83 = vmatpush1.bf16.xpose.msra.mxu0 0
    %84 = vmatprep.subr.bf16.mxu0 0
    %85 = vmatpush1.bf16.xpose.msra.mxu0 0
    %86 = vmatprep.subr.bf16.mxu0 0
    %87 = vmatpush1.bf16.xpose.msra.mxu0 %v70
    %88 = vmatprep.subr.bf16.mxu0 0
    %89 = vmatpush2.bf16.xpose.msra.mxu0 0
    %90 = vmatprep.subr.bf16.mxu0 0
    %91 = vmatpush2.bf16.xpose.msra.mxu0 0
    %92 = vmatprep.subr.bf16.mxu0 0
    %93 = vmatpush2.bf16.xpose.msra.mxu0 0
    %94 = vmatprep.subr.bf16.mxu0 0
    %95 = vmatpush2.bf16.xpose.msra.mxu0 0
    %96 = vmatprep.subr.bf16.mxu0 0
    %97 = vmatpush2.bf16.xpose.msra.mxu0 0
    %98 = vmatprep.subr.bf16.mxu0 0
    %99 = vmatpush2.bf16.xpose.msra.mxu0 0
    %100 = vmatprep.subr.bf16.mxu0 0
    %101 = vmatpush2.bf16.xpose.msra.mxu0 0
    %102 = vmatprep.subr.bf16.mxu0 0
    %103 = vmatpush2.bf16.xpose.msra.mxu0 0
    %104 = vmatprep.mubr.bf16.mxu0 0
    %105 = vmatmul.mubr.bf16.gmra.mxu0 %v64
    %v106 = vpop.f32.mrf.mxu0
    %v107 = vadd.f32 %v35, %v106
    %v108 = vpop.f32.mrf.mxu0
    %v109 = vpop.f32.mrf.mxu0
    %v110 = vadd.f32 %v40, %v109
    %v111 = vpop.f32.mrf.mxu0
    %112 = vmatprep.mubr.bf16.mxu0 0
    %113 = vmatmul.mubr.bf16.gmra.mxu0 %v67
    %v114 = vpop.f32.mrf.mxu0
    %v115 = vadd.f32 %v45, %v114
    %v116 = vpop.f32.mrf.mxu0
    %v117 = vpop.f32.mrf.mxu0
    %v118 = vadd.f32 %v50, %v117
    %v119 = vpop.f32.mrf.mxu0
    %120 = vdwg.mxu0
    %v121 = vmax.f32 %v107, 0.0
    %v122 = vmax.f32 %v110, 0.0
    %v123 = vmax.f32 %v115, 0.0
    %v124 = vmax.f32 %v118, 0.0
    %v125 = vld [vmem:[%s3] sm:$0xf]
    %v126 = vld [vmem:[%s4] sm:$0xf]
    %128 = vset.pattern.permute.xlu0 0
    %129 = vperm.xlu0 %128, %v126
    %v130 = vpop.permute.xlu0 %129
    %vm132 = vcmask 261120
    %v134 = vsel %vm132, %v125, 0
    %136 = vmatprep.subr.mxu0 0.0
    %137 = vmatpush1.msra.mxu0 0.0
    %138 = vmatprep.subr.mxu0 0.0
    %139 = vmatpush1.msra.mxu0 0.0
    %140 = vmatprep.subr.mxu0 0.0
    %141 = vmatpush1.msra.mxu0 0.0
    %142 = vmatprep.subr.mxu0 0.0
    %143 = vmatpush1.msra.mxu0 0.0
    %144 = vmatprep.subr.mxu0 0.0
    %145 = vmatpush1.msra.mxu0 0.0
    %146 = vmatprep.subr.mxu0 0.0
    %147 = vmatpush1.msra.mxu0 0.0
    %148 = vmatprep.subr.mxu0 0.0
    %149 = vmatpush1.msra.mxu0 0.0
    %150 = vmatprep.subr.mxu0 0.0
    %151 = vmatpush1.msra.mxu0 0.0
    %152 = vmatprep.subr.mxu0 0.0
    %153 = vmatpush1.msra.mxu0 0.0
    %154 = vmatprep.subr.mxu0 0.0
    %155 = vmatpush1.msra.mxu0 0.0
    %156 = vmatprep.subr.mxu0 0.0
    %157 = vmatpush1.msra.mxu0 0.0
    %158 = vmatprep.subr.mxu0 0.0
    %159 = vmatpush1.msra.mxu0 0.0
    %160 = vmatprep.subr.mxu0 0.0
    %161 = vmatpush1.msra.mxu0 %v124
    %162 = vmatprep.subr.mxu0 0.0
    %163 = vmatpush1.msra.mxu0 %v123
    %164 = vmatprep.subr.mxu0 0.0
    %165 = vmatpush1.msra.mxu0 %v122
    %166 = vmatprep.subr.mxu0 0.0
    %167 = vmatpush1.msra.mxu0 %v121
    %168 = vmatprep.subr.mxu0 0.0
    %169 = vmatpush2.msra.mxu0 0.0
    %170 = vmatprep.subr.mxu0 0.0
    %171 = vmatpush2.msra.mxu0 0.0
    %172 = vmatprep.subr.mxu0 0.0
    %173 = vmatpush2.msra.mxu0 0.0
    %174 = vmatprep.subr.mxu0 0.0
    %175 = vmatpush2.msra.mxu0 0.0
    %176 = vmatprep.subr.mxu0 0.0
    %177 = vmatpush2.msra.mxu0 0.0
    %178 = vmatprep.subr.mxu0 0.0
    %179 = vmatpush2.msra.mxu0 0.0
    %180 = vmatprep.subr.mxu0 0.0
    %181 = vmatpush2.msra.mxu0 0.0
    %182 = vmatprep.subr.mxu0 0.0
    %183 = vmatpush2.msra.mxu0 0.0
    %184 = vmatprep.subr.mxu0 0.0
    %185 = vmatpush2.msra.mxu0 0.0
    %186 = vmatprep.subr.mxu0 0.0
    %187 = vmatpush2.msra.mxu0 0.0
    %188 = vmatprep.subr.mxu0 0.0
    %189 = vmatpush2.msra.mxu0 0.0
    %190 = vmatprep.subr.mxu0 0.0
    %191 = vmatpush2.msra.mxu0 0.0
    %192 = vmatprep.subr.mxu0 0.0
    %193 = vmatpush2.msra.mxu0 0.0
    %194 = vmatprep.subr.mxu0 0.0
    %195 = vmatpush2.msra.mxu0 0.0
    %196 = vmatprep.subr.mxu0 0.0
    %197 = vmatpush2.msra.mxu0 0.0
    %198 = vmatprep.subr.mxu0 0.0
    %199 = vmatpush2.msra.mxu0 0.0
    %200 = vmatprep.mubr.f32.mxu0 0.0
    %201 = vmatmul.mubr.f32.gmra.mxu0 %v134
    %v202 = vpop.f32.mrf.mxu0
    %v203 = vadd.f32 %v130, %v202
    %v204 = vpop.f32.mrf.mxu0
    %205 = vdwg.mxu0
    %vm206 = vcmask 60416
    %v207 = vsel %vm206, %v203, -inf
    %v208 = vrot.slane %v207, 4
    %v209 = vmax.f32 %v207, %v208
    %v210 = vrot.slane %v209, 2
    %v211 = vmax.f32 %v209, %v210
    %v212 = vrot.slane %v211, 1
    %v213 = vmax.f32 %v211, %v212
    %v214 = vsub.f32 %v203, %v213
    %v215 = vmul.f32 %v214, 1.442695
    %v216 = vpow.pop %v215
    %v217 = vsel %vm206, %v216, 0.0
    %v218 = vrot.slane %v217, 4
    %v219 = vadd.f32 %v217, %v218
    %v220 = vrot.slane %v219, 2
    %v221 = vadd.f32 %v219, %v220
    %v222 = vrot.slane %v221, 1
    %v223 = vadd.f32 %v221, %v222
    %v224 = vrcp.pop %v223
    %v225 = vmul.f32 %v216, %v224
    %226 = vst.msk [vmem:[#allocation2] sm:$0xf] %vm206, %v225
    // Predicated region
    $region22: #{tpu_custom_call.1} parent=1 // pred_check
      _
    $region23: #{tpu_custom_call.1} parent=1 // pred_check_branch
      %228 = sbr.rel (0) target = $region25
    $region24: #{tpu_custom_call.1} parent=1 // pred_region
      %s230 = ssub.s32 64, 64
      %231 = vsyncadd [#allocation3], %s230
      %s233 = sshll.u32 [#allocation2], 4
      %s234 = int_to_ptr.vmem [resolvable:$true] %s233
      %236 = dma.vmem_to_hbm [thread:$0]  %s234, 64, %s5, [#allocation3]
    $region25: #{tpu_custom_call.1} parent=1 // pred_fallthru
      _
    // Predicated region
    $region26: #{tpu_custom_call.1} parent=1 // pred_check
      _
    $region27: #{tpu_custom_call.1} parent=1 // pred_check_branch
      %238 = sbr.rel (0) target = $region29
    $region28: #{tpu_custom_call.1} parent=1 // pred_region
      %239 = dma.done [#allocation3], 64
    $region29: #{tpu_custom_call.1} parent=1 // pred_fallthru
      _
    %240 = vsyncpa [#allocation3], 1

</llo_original>
